<compile_context>
chip_gen: v6e
topology: v6e:2x2x1
jax: 0.10.0
libtpu: 0.0.40
codegen_flags: <defaults>
</compile_context>

<pallas_src>
import functools
import math

import jax
import jax.numpy as jnp
from jax.experimental import pallas as pl
from jax.experimental.pallas import tpu as pltpu

VOCAB = 1536           # decoder output size (fixed to 1536 in the module)
LN_EPS = 1e-12         # BERT-style layer_norm_eps
_INV_SQRT2 = 1.0 / math.sqrt(2.0)


def _round_up(x, m):
    return ((x + m - 1) // m) * m


def _vmem_limit_bytes():
    """Generation-aware VMEM budget: ~96 MiB on 128-MiB parts (v5e/v6e),
    physical-minus-headroom (~56 MiB) on 64-MiB parts (v7x)."""
    try:
        cap = int(pltpu.get_tpu_info().vmem_capacity_bytes)
    except Exception:
        cap = 64 * 1024 * 1024      # conservative fallback (v7x-sized)
    return int(min(96 * 1024 * 1024, cap - 8 * 1024 * 1024))


_VMEM_LIMIT = _vmem_limit_bytes()


def _probe_single_buffering():
    """Probe whether pl.Buffered(1) (single-buffered resident blocks) lowers
    and runs on this jax/libtpu; fall back to default double-buffering if not."""
    def _copy(x_ref, o_ref):
        o_ref[...] = x_ref[...]
    try:
        fn = pl.pallas_call(
            _copy,
            out_shape=jax.ShapeDtypeStruct((8, 128), jnp.float32),
            grid=(1,),
            in_specs=[pl.BlockSpec((8, 128), lambda i: (0, 0),
                                   pipeline_mode=pl.Buffered(1))],
            out_specs=pl.BlockSpec((8, 128), lambda i: (0, 0)),
        )
        jax.block_until_ready(fn(jnp.zeros((8, 128), jnp.float32)))
        return True
    except Exception:
        return False


_SINGLE_BUFFER_OK = _probe_single_buffering()


def _resident_spec(shape):
    """BlockSpec for an operand whose block index never changes across the grid
    (weights / biases): the constant index_map keeps it VMEM-resident (no
    re-DMA), and single-buffering (when supported) halves its VMEM footprint."""
    idx = lambda i: (0,) * len(shape)
    if _SINGLE_BUFFER_OK:
        return pl.BlockSpec(shape, idx, pipeline_mode=pl.Buffered(1))
    return pl.BlockSpec(shape, idx)


def _mlm_head_kernel(x_ref, w1_ref, b1_ref, gamma_ref, beta_ref,
                     w2_ref, b2_ref, out_ref):
    # --- dense: hidden -> hidden (bf16 MXU, f32 accumulate) ----------------
    h = jnp.dot(x_ref[...], w1_ref[...],
                preferred_element_type=jnp.float32) + b1_ref[...]

    # --- exact (erf-based) GELU, matching the PyTorch `gelu`, in f32 -------
    h = h * 0.5 * (1.0 + jax.lax.erf(h * _INV_SQRT2))

    # --- LayerNorm over the hidden axis (stable two-pass, f32) -------------
    mean = jnp.mean(h, axis=-1, keepdims=True)
    c = h - mean
    var = jnp.mean(c * c, axis=-1, keepdims=True)
    h = c * jax.lax.rsqrt(var + LN_EPS)
    h = h * gamma_ref[...] + beta_ref[...]

    # --- decoder: hidden -> 1536 with tied bias (bf16 MXU, f32 acc) --------
    out_ref[...] = (
        jnp.dot(h.astype(jnp.bfloat16), w2_ref[...],
                preferred_element_type=jnp.float32) + b2_ref[...]
    ).astype(out_ref.dtype)


@functools.partial(jax.jit, static_argnames=("tm", "out_dtype"))
def visual_only_mlm_head(sequence_output, params, *, tm=512,
                         out_dtype=jnp.float32):
    """JAX/Pallas equivalent of VisualLMPredictionHead.forward.

    sequence_output: (B, S, H)
    returns:         (B, S, 1536) in `out_dtype` (f32 default; pass
                     jnp.bfloat16 to halve the output HBM stream if the
                     downstream consumer tolerates it)
    """
    B, S, H = sequence_output.shape
    M = B * S

    # Flatten and stream the activation in bf16 (numerically identical to the
    # previous in-kernel cast; halves the per-tile x DMA).  No jnp.pad - the
    # partial final block is handled by Pallas.
    x2d = sequence_output.reshape(M, H).astype(jnp.bfloat16)

    # Tile over tokens; keep the tile a multiple of 8 sublanes.
    TM = min(tm, _round_up(M, 8))
    steps = pl.cdiv(M, TM)
    if steps % 2 == 1 and M > 8:
        # Prefer an even step count so the "parallel" M axis load-balances
        # across v7x's two TensorCores (no effect on single-TC v5e/v6e).
        TM = _round_up(pl.cdiv(M, steps + 1), 8)
        steps = pl.cdiv(M, TM)

    # Weights are used as-is when already bf16 (see prepare_params); the
    # astype is then a no-op, so repeated calls do not re-cast them.
    w1 = params["dense_w"].astype(jnp.bfloat16)      # (H, H)     (in, out)
    b1 = params["dense_b"].astype(jnp.float32)       # (1, H)
    gamma = params["ln_gamma"].astype(jnp.float32)   # (1, H)
    beta = params["ln_beta"].astype(jnp.float32)     # (1, H)
    w2 = params["dec_w"].astype(jnp.bfloat16)        # (H, VOCAB)
    b2 = params["dec_b"].astype(jnp.float32)         # (1, VOCAB)

    out_bytes = jnp.dtype(out_dtype).itemsize
    cost = pl.CostEstimate(
        flops=2 * M * H * (H + VOCAB),
        transcendentals=M * H,
        bytes_accessed=(M * H * 2 + H * H * 2 + H * VOCAB * 2
                        + 3 * H * 4 + VOCAB * 4 + M * VOCAB * out_bytes),
    )

    out = pl.pallas_call(
        _mlm_head_kernel,
        out_shape=jax.ShapeDtypeStruct((M, VOCAB), out_dtype),
        grid=(steps,),
        in_specs=[
            pl.BlockSpec((TM, H), lambda i: (i, 0)),   # x tile (pipelined)
            _resident_spec((H, H)),                    # w1 (resident)
            _resident_spec((1, H)),                    # b1
            _resident_spec((1, H)),                    # gamma
            _resident_spec((1, H)),                    # beta
            _resident_spec((H, VOCAB)),                # w2 (resident)
            _resident_spec((1, VOCAB)),                # b2
        ],
        out_specs=pl.BlockSpec((TM, VOCAB), lambda i: (i, 0)),
        compiler_params=pltpu.CompilerParams(
            dimension_semantics=("parallel",),         # shard tiles across TCs
            vmem_limit_bytes=_VMEM_LIMIT,
        ),
        cost_estimate=cost,
    )(x2d, w1, b1, gamma, beta, w2, b2)

    return out.reshape(B, S, VOCAB)


def prepare_params(params):
    """One-time conversion of the big matmul weights to bf16 so repeated calls
    of the jitted head do not re-cast (and re-stream) them every invocation."""
    p = dict(params)
    p["dense_w"] = params["dense_w"].astype(jnp.bfloat16)
    p["dec_w"] = params["dec_w"].astype(jnp.bfloat16)
    return p


def init_params(key, hidden_size):
    """Deterministic synthetic parameters with the shapes the module implies."""
    k1, k2, k3 = jax.random.split(key, 3)
    scale1 = 1.0 / math.sqrt(hidden_size)
    params = {
        # nn.Linear(H, H): weight (H_out, H_in) -> stored transposed (H_in, H_out)
        "dense_w": (jax.random.normal(k1, (hidden_size, hidden_size),
                                      jnp.float32) * scale1),
        "dense_b": (jax.random.normal(k2, (1, hidden_size),
                                      jnp.float32) * 0.02),
        # LayerNorm(H): gamma=1, beta=0 (PyTorch default init)
        "ln_gamma": jnp.ones((1, hidden_size), jnp.float32),
        "ln_beta": jnp.zeros((1, hidden_size), jnp.float32),
        # nn.Linear(H, 1536, bias=False) with tied bias parameter (init zeros)
        "dec_w": (jax.random.normal(k3, (hidden_size, VOCAB),
                                    jnp.float32) * scale1),
        "dec_b": jnp.zeros((1, VOCAB), jnp.float32),
    }
    return params


def _reference(sequence_output, params):
    """Pure-JAX f32 reference of the PyTorch module forward."""
    x = sequence_output
    h = x @ params["dense_w"] + params["dense_b"][0]
    h = h * 0.5 * (1.0 + jax.lax.erf(h / math.sqrt(2.0)))
    mean = jnp.mean(h, axis=-1, keepdims=True)
    var = jnp.mean((h - mean) ** 2, axis=-1, keepdims=True)
    h = (h - mean) / jnp.sqrt(var + LN_EPS)
    h = h * params["ln_gamma"][0] + params["ln_beta"][0]
    return h @ params["dec_w"] + params["dec_b"][0]


if __name__ == "__main__":
    B, S, H = 2, 8, 32
    key = jax.random.PRNGKey(0)
    k_x, k_p = jax.random.split(key)
    x = jax.random.normal(k_x, (B, S, H), jnp.float32)
    params = init_params(k_p, H)

    out = visual_only_mlm_head(x, prepare_params(params))
    out = jax.block_until_ready(out)

    ref = _reference(x, params)
    assert out.shape == (B, S, VOCAB), out.shape
    # bf16 MXU operands / bf16 streamed x -> allow ~1% deviation vs pure-f32 ref.
    assert jnp.allclose(out, ref, atol=5e-2, rtol=5e-2), (
        float(jnp.max(jnp.abs(out - ref))))
    print("KERNEL_OK")
</pallas_src>

<mosaic_0001>
module attributes {stable_mosaic.version = 11 : i64} {
  func.func @_copy(%arg0: i32, %arg1: memref<8x128xf32, #tpu.memory_space<vmem>>, %arg2: memref<8x128xf32, #tpu.memory_space<vmem>>) attributes {dimension_semantics = [#tpu.dimension_semantics<arbitrary>], iteration_bounds = array<i64: 1>, scalar_prefetch = 0 : i64, scratch_operands = 0 : i64, tpu.core_type = #tpu.core_type<tc>, window_params = [{pipeline_mode = #tpu.pipeline_mode<synchronous>, transform_indices = @transform_0, window_bounds = array<i64: 8, 128>}, {pipeline_mode = #tpu.pipeline_mode<synchronous>, transform_indices = @transform_1, window_bounds = array<i64: 8, 128>}]} {
    %c0 = arith.constant 0 : index
    %c0_0 = arith.constant 0 : index
    %0 = vector.load %arg1[%c0, %c0_0] : memref<8x128xf32, #tpu.memory_space<vmem>>, vector<8x128xf32>
    %c0_1 = arith.constant 0 : index
    %c0_2 = arith.constant 0 : index
    %1 = vector.load %arg2[%c0_1, %c0_2] : memref<8x128xf32, #tpu.memory_space<vmem>>, vector<8x128xf32>
    tpu.vector_store %arg2[%c0_1, %c0_2], %0 {strides = array<i32>} : memref<8x128xf32, #tpu.memory_space<vmem>>, vector<8x128xf32>,
    return
  }
  func.func @transform_0(%arg0: i32) -> (i32, i32) {
    %c0_i32 = arith.constant 0 : i32
    %c0_i32_0 = arith.constant 0 : i32
    %c0_i32_1 = arith.constant 0 : i32
    return %c0_i32, %c0_i32_0 : i32, i32
  }
  func.func @transform_1(%arg0: i32) -> (i32, i32) {
    %c0_i32 = arith.constant 0 : i32
    %c0_i32_0 = arith.constant 0 : i32
    %c0_i32_1 = arith.constant 0 : i32
    return %c0_i32, %c0_i32_0 : i32, i32
  }
}

module attributes {stable_mosaic.version = 11 : i64} {
  func.func @_mlm_head_kernel(%arg0: i32, %arg1: memref<8x32xbf16, #tpu.memory_space<vmem>>, %arg2: memref<32x32xbf16, #tpu.memory_space<vmem>>, %arg3: memref<1x32xf32, #tpu.memory_space<vmem>>, %arg4: memref<1x32xf32, #tpu.memory_space<vmem>>, %arg5: memref<1x32xf32, #tpu.memory_space<vmem>>, %arg6: memref<32x1536xbf16, #tpu.memory_space<vmem>>, %arg7: memref<1x1536xf32, #tpu.memory_space<vmem>>, %arg8: memref<8x1536xf32, #tpu.memory_space<vmem>>) attributes {dimension_semantics = [#tpu.dimension_semantics<parallel>], iteration_bounds = array<i64: 2>, scalar_prefetch = 0 : i64, scratch_operands = 0 : i64, tpu.core_type = #tpu.core_type<tc>, window_params = [{transform_indices = @transform_0, window_bounds = array<i64: 8, 32>}, {pipeline_mode = #tpu.pipeline_mode<synchronous>, transform_indices = @transform_1, window_bounds = array<i64: 32, 32>}, {pipeline_mode = #tpu.pipeline_mode<synchronous>, transform_indices = @transform_2, window_bounds = array<i64: 1, 32>}, {pipeline_mode = #tpu.pipeline_mode<synchronous>, transform_indices = @transform_3, window_bounds = array<i64: 1, 32>}, {pipeline_mode = #tpu.pipeline_mode<synchronous>, transform_indices = @transform_4, window_bounds = array<i64: 1, 32>}, {pipeline_mode = #tpu.pipeline_mode<synchronous>, transform_indices = @transform_5, window_bounds = array<i64: 32, 1536>}, {pipeline_mode = #tpu.pipeline_mode<synchronous>, transform_indices = @transform_6, window_bounds = array<i64: 1, 1536>}, {transform_indices = @transform_7, window_bounds = array<i64: 8, 1536>}]} {
    %c0 = arith.constant 0 : index
    %c0_0 = arith.constant 0 : index
    %0 = vector.load %arg1[%c0, %c0_0] : memref<8x32xbf16, #tpu.memory_space<vmem>>, vector<8x32xbf16>
    %c0_1 = arith.constant 0 : index
    %c0_2 = arith.constant 0 : index
    %1 = vector.load %arg2[%c0_1, %c0_2] : memref<32x32xbf16, #tpu.memory_space<vmem>>, vector<32x32xbf16>
    %cst = arith.constant dense<0.000000e+00> : vector<8x32xf32>
    %2 = tpu.matmul %0, %1, %cst {dimension_numbers = #tpu.dot_dimension_numbers<[1], [0], [0], [1], [0, 0, 1, 1], [], []>} : vector<8x32xbf16>, vector<32x32xbf16>, vector<8x32xf32> -> vector<8x32xf32>
    %c0_3 = arith.constant 0 : index
    %c0_4 = arith.constant 0 : index
    %3 = vector.load %arg3[%c0_3, %c0_4] : memref<1x32xf32, #tpu.memory_space<vmem>>, vector<1x32xf32>
    %4 = vector.broadcast %3 : vector<1x32xf32> to vector<8x32xf32>
    %5 = arith.addf %2, %4 : vector<8x32xf32>
    %cst_5 = arith.constant 5.000000e-01 : f32
    %6 = vector.broadcast %cst_5 : f32 to vector<8x32xf32>
    %7 = arith.mulf %5, %6 : vector<8x32xf32>
    %cst_6 = arith.constant 0.707106769 : f32
    %8 = vector.broadcast %cst_6 : f32 to vector<8x32xf32>
    %9 = arith.mulf %5, %8 : vector<8x32xf32>
    %10 = math.erf %9 : vector<8x32xf32>
    %cst_7 = arith.constant 1.000000e+00 : f32
    %11 = vector.broadcast %cst_7 : f32 to vector<8x32xf32>
    %12 = arith.addf %11, %10 : vector<8x32xf32>
    %13 = arith.mulf %7, %12 : vector<8x32xf32>
    %cst_8 = arith.constant dense<0.000000e+00> : vector<8xf32>
    %14 = vector.multi_reduction <add>, %13, %cst_8 [1] : vector<8x32xf32> to vector<8xf32>
    %15 = vector.shape_cast %14 : vector<8xf32> to vector<8x1xf32>
    %cst_9 = arith.constant 3.200000e+01 : f32
    %16 = vector.broadcast %cst_9 : f32 to vector<8x1xf32>
    %17 = arith.divf %15, %16 : vector<8x1xf32>
    %18 = vector.broadcast %17 : vector<8x1xf32> to vector<8x32xf32>
    %19 = arith.subf %13, %18 : vector<8x32xf32>
    %20 = arith.mulf %19, %19 : vector<8x32xf32>
    %cst_10 = arith.constant dense<0.000000e+00> : vector<8xf32>
    %21 = vector.multi_reduction <add>, %20, %cst_10 [1] : vector<8x32xf32> to vector<8xf32>
    %22 = vector.shape_cast %21 : vector<8xf32> to vector<8x1xf32>
    %cst_11 = arith.constant 3.200000e+01 : f32
    %23 = vector.broadcast %cst_11 : f32 to vector<8x1xf32>
    %24 = arith.divf %22, %23 : vector<8x1xf32>
    %cst_12 = arith.constant 9.99999996E-13 : f32
    %25 = vector.broadcast %cst_12 : f32 to vector<8x1xf32>
    %26 = arith.addf %24, %25 : vector<8x1xf32>
    %27 = math.rsqrt %26 : vector<8x1xf32>
    %28 = vector.broadcast %27 : vector<8x1xf32> to vector<8x32xf32>
    %29 = arith.mulf %19, %28 : vector<8x32xf32>
    %c0_13 = arith.constant 0 : index
    %c0_14 = arith.constant 0 : index
    %30 = vector.load %arg4[%c0_13, %c0_14] : memref<1x32xf32, #tpu.memory_space<vmem>>, vector<1x32xf32>
    %31 = vector.broadcast %30 : vector<1x32xf32> to vector<8x32xf32>
    %32 = arith.mulf %29, %31 : vector<8x32xf32>
    %c0_15 = arith.constant 0 : index
    %c0_16 = arith.constant 0 : index
    %33 = vector.load %arg5[%c0_15, %c0_16] : memref<1x32xf32, #tpu.memory_space<vmem>>, vector<1x32xf32>
    %34 = vector.broadcast %33 : vector<1x32xf32> to vector<8x32xf32>
    %35 = arith.addf %32, %34 : vector<8x32xf32>
    %36 = arith.truncf %35 : vector<8x32xf32> to vector<8x32xbf16>
    %c0_17 = arith.constant 0 : index
    %c0_18 = arith.constant 0 : index
    %37 = vector.load %arg6[%c0_17, %c0_18] : memref<32x1536xbf16, #tpu.memory_space<vmem>>, vector<32x1536xbf16>
    %cst_19 = arith.constant dense<0.000000e+00> : vector<8x1536xf32>
    %38 = tpu.matmul %36, %37, %cst_19 {dimension_numbers = #tpu.dot_dimension_numbers<[1], [0], [0], [1], [0, 0, 1, 1], [], []>} : vector<8x32xbf16>, vector<32x1536xbf16>, vector<8x1536xf32> -> vector<8x1536xf32>
    %c0_20 = arith.constant 0 : index
    %c0_21 = arith.constant 0 : index
    %39 = vector.load %arg7[%c0_20, %c0_21] : memref<1x1536xf32, #tpu.memory_space<vmem>>, vector<1x1536xf32>
    %40 = vector.broadcast %39 : vector<1x1536xf32> to vector<8x1536xf32>
    %41 = arith.addf %38, %40 : vector<8x1536xf32>
    %c0_22 = arith.constant 0 : index
    %c0_23 = arith.constant 0 : index
    %42 = vector.load %arg8[%c0_22, %c0_23] : memref<8x1536xf32, #tpu.memory_space<vmem>>, vector<8x1536xf32>
    tpu.vector_store %arg8[%c0_22, %c0_23], %41 {strides = array<i32>} : memref<8x1536xf32, #tpu.memory_space<vmem>>, vector<8x1536xf32>,
    return
  }
  func.func @transform_0(%arg0: i32) -> (i32, i32) {
    %c0_i32 = arith.constant 0 : i32
    %c0_i32_0 = arith.constant 0 : i32
    return %arg0, %c0_i32 : i32, i32
  }
  func.func @transform_1(%arg0: i32) -> (i32, i32) {
    %c0_i32 = arith.constant 0 : i32
    %c0_i32_0 = arith.constant 0 : i32
    %c0_i32_1 = arith.constant 0 : i32
    return %c0_i32, %c0_i32_0 : i32, i32
  }
  func.func @transform_2(%arg0: i32) -> (i32, i32) {
    %c0_i32 = arith.constant 0 : i32
    %c0_i32_0 = arith.constant 0 : i32
    %c0_i32_1 = arith.constant 0 : i32
    return %c0_i32, %c0_i32_0 : i32, i32
  }
  func.func @transform_3(%arg0: i32) -> (i32, i32) {
    %c0_i32 = arith.constant 0 : i32
    %c0_i32_0 = arith.constant 0 : i32
    %c0_i32_1 = arith.constant 0 : i32
    return %c0_i32, %c0_i32_0 : i32, i32
  }
  func.func @transform_4(%arg0: i32) -> (i32, i32) {
    %c0_i32 = arith.constant 0 : i32
    %c0_i32_0 = arith.constant 0 : i32
    %c0_i32_1 = arith.constant 0 : i32
    return %c0_i32, %c0_i32_0 : i32, i32
  }
  func.func @transform_5(%arg0: i32) -> (i32, i32) {
    %c0_i32 = arith.constant 0 : i32
    %c0_i32_0 = arith.constant 0 : i32
    %c0_i32_1 = arith.constant 0 : i32
    return %c0_i32, %c0_i32_0 : i32, i32
  }
  func.func @transform_6(%arg0: i32) -> (i32, i32) {
    %c0_i32 = arith.constant 0 : i32
    %c0_i32_0 = arith.constant 0 : i32
    %c0_i32_1 = arith.constant 0 : i32
    return %c0_i32, %c0_i32_0 : i32, i32
  }
  func.func @transform_7(%arg0: i32) -> (i32, i32) {
    %c0_i32 = arith.constant 0 : i32
    %c0_i32_0 = arith.constant 0 : i32
    return %arg0, %c0_i32 : i32, i32
  }
}

</mosaic_0001>

<llo_original>
// kernel: tpu_custom_call.1
$region0: #{tpu_custom_call.1}
  #allocation0 [shape = 'u32[]', space=smem, size = 0x4, offset = 0x4, fixed_abs, tag = 'smem constant byte address 0x4 - core index']
  #allocation1 [shape = 'u32[144,128]{1,0:T(1,128)}', space=vmem, size = 0x12000, scoped, tag = 'internal scratch']
  %s0 = inlined_call_operand.hbm [shape: f32[8,128], index: 0, kind: input, shape index: {}]
  %s1 = inlined_call_operand.hbm [shape: f32[8,128], index: 1, kind: output, shape index: {}]
  %s2 = sld [smem:[#allocation0]]
  $region18: #{tpu_custom_call.1} parent=0
    _
  %s4 = ssub.s32 1, %s2
  %s5 = scalar_select 0, %s4, %s2
  $region1: #{tpu_custom_call.1} parent=0
    #allocation2 [shape = 'u8[4096]{0}', space=vmem, size = 0x1000, scoped, tag = 'input window, operand 0, single buffered']
    #allocation3 [shape = 's32[1]{0}', space=sflag, size = 0x4, scoped, tag = 'scoped memory for tpu_custom_call.1']
    #allocation4 [shape = 's32[1]{0}', space=sflag, size = 0x4, scoped, tag = 'scoped memory for tpu_custom_call.1']
    #allocation5 [shape = 'u8[4096]{0}', space=vmem, size = 0x1000, scoped, tag = 'output window, operand 0, single buffered']
    %6 = vsyncpa [#allocation3], 0
    %7 = vsyncpa [#allocation4], 0
    // Predicated region
    $region2: #{tpu_custom_call.1} parent=1 // pred_check
      _
    $region3: #{tpu_custom_call.1} parent=1 // pred_check_branch
      %9 = sbr.rel (0) target = $region5
    $region4: #{tpu_custom_call.1} parent=1 // pred_region
      %s11 = ssub.s32 128, 128
      %12 = vsyncadd [#allocation3], %s11
      %s14 = sshll.u32 [#allocation2], 4
      %s15 = int_to_ptr.vmem [resolvable:$true] %s14
      %17 = dma.hbm_to_vmem [thread:$0]  %s0, 128, %s15, [#allocation3]
    $region5: #{tpu_custom_call.1} parent=1 // pred_fallthru
      _
    // Predicated region
    $region6: #{tpu_custom_call.1} parent=1 // pred_check
      _
    $region7: #{tpu_custom_call.1} parent=1 // pred_check_branch
      %19 = sbr.rel (0) target = $region9
    $region8: #{tpu_custom_call.1} parent=1 // pred_region
      %20 = dma.done [#allocation3], 128
    $region9: #{tpu_custom_call.1} parent=1 // pred_fallthru
      _
    %v21 = vld [vmem:[#allocation2] sm:$0xff]
    %22 = vst [vmem:[#allocation5] sm:$0xff] %v21
    // Predicated region
    $region10: #{tpu_custom_call.1} parent=1 // pred_check
      _
    $region11: #{tpu_custom_call.1} parent=1 // pred_check_branch
      %24 = sbr.rel (0) target = $region13
    $region12: #{tpu_custom_call.1} parent=1 // pred_region
      %s26 = ssub.s32 128, 128
      %27 = vsyncadd [#allocation4], %s26
      %s29 = sshll.u32 [#allocation5], 4
      %s30 = int_to_ptr.vmem [resolvable:$true] %s29
      %32 = dma.vmem_to_hbm [thread:$0]  %s30, 128, %s1, [#allocation4]
    $region13: #{tpu_custom_call.1} parent=1 // pred_fallthru
      _
    // Predicated region
    $region14: #{tpu_custom_call.1} parent=1 // pred_check
      _
    $region15: #{tpu_custom_call.1} parent=1 // pred_check_branch
      %34 = sbr.rel (0) target = $region17
    $region16: #{tpu_custom_call.1} parent=1 // pred_region
      %35 = dma.done [#allocation4], 128
    $region17: #{tpu_custom_call.1} parent=1 // pred_fallthru
      _
    %36 = vsyncpa [#allocation3], 1
    %37 = vsyncpa [#allocation4], 1

// kernel: visual_only_mlm_head.1
$region0: #{visual_only_mlm_head.1}
  #allocation0 [shape = 'u32[]', space=smem, size = 0x4, offset = 0x4, fixed_abs, tag = 'smem constant byte address 0x4 - core index']
  #allocation1 [shape = 'u32[144,128]{1,0:T(1,128)}', space=vmem, size = 0x12000, scoped, tag = 'internal scratch']
  %s0 = inlined_call_operand.vmem [shape: bf16[16,32], index: 0, kind: input, shape index: {}]
  %s1 = inlined_call_operand.vmem [shape: bf16[32,32], index: 1, kind: input, shape index: {}]
  %s2 = inlined_call_operand.vmem [shape: f32[1,32], index: 2, kind: input, shape index: {}]
  %s3 = inlined_call_operand.vmem [shape: f32[1,32], index: 3, kind: input, shape index: {}]
  %s4 = inlined_call_operand.vmem [shape: f32[1,32], index: 4, kind: input, shape index: {}]
  %s5 = inlined_call_operand.hbm [shape: bf16[32,1536], index: 5, kind: input, shape index: {}]
  %s6 = inlined_call_operand.vmem [shape: f32[1,1536], index: 6, kind: input, shape index: {}]
  %s7 = inlined_call_operand.hbm [shape: f32[16,1536], index: 7, kind: output, shape index: {}]
  %s8 = sld [smem:[#allocation0]]
  $region65: #{visual_only_mlm_head.1} parent=0
    _
  %s10 = ssub.s32 1, %s8
  %s11 = scalar_select 0, %s10, %s8
  $region1: #{visual_only_mlm_head.1} parent=0
    #allocation2 [shape = 'u8[98304]{0}', space=vmem, size = 0x18000, scoped, tag = 'input window, operand 5, single buffered']
    #allocation3 [shape = 's32[2]{0}', space=sflag, size = 0x8, scoped, tag = 'scoped memory for visual_only_mlm_head.1']
    #allocation4 [shape = 's32[2]{0}', space=sflag, size = 0x8, scoped, tag = 'scoped memory for visual_only_mlm_head.1']
    #allocation5 [shape = 'u8[98304]{0}', space=vmem, size = 0x18000, scoped, tag = 'output window, operand 0']
    %12 = vsyncpa [#allocation3], 0
    %13 = vsyncpa [#allocation4], 0
    %s14 = scalar_lea.sflag [#allocation4], 1
    %15 = vsyncpa %s14, 0
    loop: start=0, step=1, limit=4
    $region2: #{visual_only_mlm_head.1} parent=1 // loop_pre_header
      _
    $region3: #{visual_only_mlm_head.1} parent=1 // loop_header
      %s17 = sphi 0, %s21
      %p18 = scmp.ge.s32.totalorder %s17, 4
      %s27 = sphi 0, %s29
      %s30 = sphi 0, %s27
      %s31 = sphi 0, %s30
      %s47 = sphi 0, %s31
      %s51 = sphi 0, %s51
      %s53 = sphi 0, %s51
      %s54 = sphi 0, %s53
      %s68 = sphi 0, %s54
      %s72 = sphi 0, %s72
      %s74 = sphi 0, %s72
      %s75 = sphi 0, %s74
      %s89 = sphi 0, %s75
      %s93 = sphi 0, %s93
      %s95 = sphi 0, %s93
      %s96 = sphi 0, %s95
      %s110 = sphi 0, %s96
      %s114 = sphi 0, %s114
      %s116 = sphi 0, %s114
      %s117 = sphi 0, %s116
      %s131 = sphi 0, %s117
      %s135 = sphi 0, %s135
      %s137 = sphi 0, %s135
      %s138 = sphi 0, %s137
      %s152 = sphi 0, %s138
      %s156 = sphi 0, %s156
      %s158 = sphi 0, %s156
      %s159 = sphi 0, %s158
      %s173 = sphi 0, %s159
      %s179 = sphi 0, %s181
      %s182 = sphi 0, %s179
      %s183 = sphi 0, %s182
      %s199 = sphi 0, %s183
    $region4: #{visual_only_mlm_head.1} parent=1 // loop_header_branch
      %20 = sbr.rel (%p18) target = $region8
    $region5: #{visual_only_mlm_head.1} parent=1 // loop_body
      %s22 = ssub.s32 %s17, 1
      %s23 = ssub.s32 %s17, 2
      %s24 = sadd.s32 %s17, 1
      %s25 = ssub.s32 %s17, %s24
      %p26 = scmp.eq.s32.totalorder %s25, 0
      %s28 = sadd.s32 %s27, 1
      %s29 = scalar_select %p26, %s27, %s28
      %p32 = pneg %p26
      %p33 = scmp.eq.s32.totalorder %s17, 1
      %p34 = por %p32, %p33
      %p35 = scmp.ne.s32.totalorder %s27, %s30
      %p36 = scmp.eq.s32.totalorder %s17, 0
      %p37 = por %p35, %p36
      %p38 = scmp.ne.s32.totalorder %s27, %s30
      %p39 = scmp.eq.s32.totalorder %s22, 1
      %p40 = por %p38, %p39
      %p41 = scmp.ne.s32.totalorder %s30, %s31
      %p42 = scmp.eq.s32.totalorder %s22, 0
      %p43 = por %p41, %p42
      %p44 = scmp.ne.s32.totalorder %s30, %s31
      %p45 = scmp.eq.s32.totalorder %s23, 1
      %p46 = por %p44, %p45
      %p48 = scmp.ne.s32.totalorder %s31, %s47
      %p49 = scmp.eq.s32.totalorder %s23, 0
      %p50 = por %p48, %p49
      %s52 = sadd.s32 %s51, 1
      %p55 = scmp.eq.s32.totalorder %s17, 1
      %p56 = scmp.ne.s32.totalorder %s51, %s53
      %p57 = scmp.eq.s32.totalorder %s17, 0
      %p58 = por %p56, %p57
      %p59 = scmp.ne.s32.totalorder %s51, %s53
      %p60 = scmp.eq.s32.totalorder %s22, 1
      %p61 = por %p59, %p60
      %p62 = scmp.ne.s32.totalorder %s53, %s54
      %p63 = scmp.eq.s32.totalorder %s22, 0
      %p64 = por %p62, %p63
      %p65 = scmp.ne.s32.totalorder %s53, %s54
      %p66 = scmp.eq.s32.totalorder %s23, 1
      %p67 = por %p65, %p66
      %p69 = scmp.ne.s32.totalorder %s54, %s68
      %p70 = scmp.eq.s32.totalorder %s23, 0
      %p71 = por %p69, %p70
      %s73 = sadd.s32 %s72, 1
      %p76 = scmp.eq.s32.totalorder %s17, 1
      %p77 = scmp.ne.s32.totalorder %s72, %s74
      %p78 = scmp.eq.s32.totalorder %s17, 0
      %p79 = por %p77, %p78
      %p80 = scmp.ne.s32.totalorder %s72, %s74
      %p81 = scmp.eq.s32.totalorder %s22, 1
      %p82 = por %p80, %p81
      %p83 = scmp.ne.s32.totalorder %s74, %s75
      %p84 = scmp.eq.s32.totalorder %s22, 0
      %p85 = por %p83, %p84
      %p86 = scmp.ne.s32.totalorder %s74, %s75
      %p87 = scmp.eq.s32.totalorder %s23, 1
      %p88 = por %p86, %p87
      %p90 = scmp.ne.s32.totalorder %s75, %s89
      %p91 = scmp.eq.s32.totalorder %s23, 0
      %p92 = por %p90, %p91
      %s94 = sadd.s32 %s93, 1
      %p97 = scmp.eq.s32.totalorder %s17, 1
      %p98 = scmp.ne.s32.totalorder %s93, %s95
      %p99 = scmp.eq.s32.totalorder %s17, 0
      %p100 = por %p98, %p99
      %p101 = scmp.ne.s32.totalorder %s93, %s95
      %p102 = scmp.eq.s32.totalorder %s22, 1
      %p103 = por %p101, %p102
      %p104 = scmp.ne.s32.totalorder %s95, %s96
      %p105 = scmp.eq.s32.totalorder %s22, 0
      %p106 = por %p104, %p105
      %p107 = scmp.ne.s32.totalorder %s95, %s96
      %p108 = scmp.eq.s32.totalorder %s23, 1
      %p109 = por %p107, %p108
      %p111 = scmp.ne.s32.totalorder %s96, %s110
      %p112 = scmp.eq.s32.totalorder %s23, 0
      %p113 = por %p111, %p112
      %s115 = sadd.s32 %s114, 1
      %p118 = scmp.eq.s32.totalorder %s17, 1
      %p119 = scmp.ne.s32.totalorder %s114, %s116
      %p120 = scmp.eq.s32.totalorder %s17, 0
      %p121 = por %p119, %p120
      %p122 = scmp.ne.s32.totalorder %s114, %s116
      %p123 = scmp.eq.s32.totalorder %s22, 1
      %p124 = por %p122, %p123
      %p125 = scmp.ne.s32.totalorder %s116, %s117
      %p126 = scmp.eq.s32.totalorder %s22, 0
      %p127 = por %p125, %p126
      %p128 = scmp.ne.s32.totalorder %s116, %s117
      %p129 = scmp.eq.s32.totalorder %s23, 1
      %p130 = por %p128, %p129
      %p132 = scmp.ne.s32.totalorder %s117, %s131
      %p133 = scmp.eq.s32.totalorder %s23, 0
      %p134 = por %p132, %p133
      %s136 = sadd.s32 %s135, 1
      %p139 = scmp.eq.s32.totalorder %s17, 1
      %p140 = scmp.ne.s32.totalorder %s135, %s137
      %p141 = scmp.eq.s32.totalorder %s17, 0
      %p142 = por %p140, %p141
      %p143 = scmp.ne.s32.totalorder %s135, %s137
      %p144 = scmp.eq.s32.totalorder %s22, 1
      %p145 = por %p143, %p144
      %p146 = scmp.ne.s32.totalorder %s137, %s138
      %p147 = scmp.eq.s32.totalorder %s22, 0
      %p148 = por %p146, %p147
      %p149 = scmp.ne.s32.totalorder %s137, %s138
      %p150 = scmp.eq.s32.totalorder %s23, 1
      %p151 = por %p149, %p150
      %p153 = scmp.ne.s32.totalorder %s138, %s152
      %p154 = scmp.eq.s32.totalorder %s23, 0
      %p155 = por %p153, %p154
      %s157 = sadd.s32 %s156, 1
      %p160 = scmp.eq.s32.totalorder %s17, 1
      %p161 = scmp.ne.s32.totalorder %s156, %s158
      %p162 = scmp.eq.s32.totalorder %s17, 0
      %p163 = por %p161, %p162
      %p164 = scmp.ne.s32.totalorder %s156, %s158
      %p165 = scmp.eq.s32.totalorder %s22, 1
      %p166 = por %p164, %p165
      %p167 = scmp.ne.s32.totalorder %s158, %s159
      %p168 = scmp.eq.s32.totalorder %s22, 0
      %p169 = por %p167, %p168
      %p170 = scmp.ne.s32.totalorder %s158, %s159
      %p171 = scmp.eq.s32.totalorder %s23, 1
      %p172 = por %p170, %p171
      %p174 = scmp.ne.s32.totalorder %s159, %s173
      %p175 = scmp.eq.s32.totalorder %s23, 0
      %p176 = por %p174, %p175
      %s177 = ssub.s32 %s17, %s24
      %p178 = scmp.eq.s32.totalorder %s177, 0
      %s180 = sadd.s32 %s179, 1
      %s181 = scalar_select %p178, %s179, %s180
      %p184 = pneg %p178
      %p185 = scmp.eq.s32.totalorder %s17, 1
      %p186 = por %p184, %p185
      %p187 = scmp.ne.s32.totalorder %s179, %s182
      %p188 = scmp.eq.s32.totalorder %s17, 0
      %p189 = por %p187, %p188
      %p190 = scmp.ne.s32.totalorder %s179, %s182
      %p191 = scmp.eq.s32.totalorder %s22, 1
      %p192 = por %p190, %p191
      %p193 = scmp.ne.s32.totalorder %s182, %s183
      %p194 = scmp.eq.s32.totalorder %s22, 0
      %p195 = por %p193, %p194
      %p196 = scmp.ne.s32.totalorder %s182, %s183
      %p197 = scmp.eq.s32.totalorder %s23, 1
      %p198 = por %p196, %p197
      %p200 = scmp.ne.s32.totalorder %s183, %s199
      %p201 = scmp.eq.s32.totalorder %s23, 0
      %p202 = por %p200, %p201
      %p203 = scmp.le.s32.totalorder 1, %s17
      %p204 = scmp.lt.s32.totalorder %s17, 3
      %p205 = pnand %p203, %p204
      %p206 = pneg %p205
      // Predicated region
      $region9: #{visual_only_mlm_head.1} parent=5 // pred_check
        _
      $region10: #{visual_only_mlm_head.1} parent=5 // pred_check_branch
        %208 = sbr.rel (%p205) target = $region12
      $region11: #{visual_only_mlm_head.1} parent=5 // pred_region
        %s209 = ssub.s32 %s17, 1
        // Predicated region
        $region13: #{visual_only_mlm_head.1} parent=11 // pred_check
          %p210 = pneg %p64
        $region14: #{visual_only_mlm_head.1} parent=11 // pred_check_branch
          %212 = sbr.rel (%p210) target = $region16
        $region15: #{visual_only_mlm_head.1} parent=11 // pred_region
          _
        $region16: #{visual_only_mlm_head.1} parent=11 // pred_fallthru
          _
        // Predicated region
        $region17: #{visual_only_mlm_head.1} parent=11 // pred_check
          %p213 = pneg %p85
        $region18: #{visual_only_mlm_head.1} parent=11 // pred_check_branch
          %215 = sbr.rel (%p213) target = $region20
        $region19: #{visual_only_mlm_head.1} parent=11 // pred_region
          _
        $region20: #{visual_only_mlm_head.1} parent=11 // pred_fallthru
          _
        // Predicated region
        $region21: #{visual_only_mlm_head.1} parent=11 // pred_check
          %p216 = pneg %p106
        $region22: #{visual_only_mlm_head.1} parent=11 // pred_check_branch
          %218 = sbr.rel (%p216) target = $region24
        $region23: #{visual_only_mlm_head.1} parent=11 // pred_region
          _
        $region24: #{visual_only_mlm_head.1} parent=11 // pred_fallthru
          _
        // Predicated region
        $region25: #{visual_only_mlm_head.1} parent=11 // pred_check
          %p219 = pneg %p127
        $region26: #{visual_only_mlm_head.1} parent=11 // pred_check_branch
          %221 = sbr.rel (%p219) target = $region28
        $region27: #{visual_only_mlm_head.1} parent=11 // pred_region
          _
        $region28: #{visual_only_mlm_head.1} parent=11 // pred_fallthru
          _
        // Predicated region
        $region29: #{visual_only_mlm_head.1} parent=11 // pred_check
          %p222 = pneg %p148
        $region30: #{visual_only_mlm_head.1} parent=11 // pred_check_branch
          %224 = sbr.rel (%p222) target = $region32
        $region31: #{visual_only_mlm_head.1} parent=11 // pred_region
          %s226 = ssub.s32 3072, 3072
          %227 = vsyncadd [#allocation3], %s226
          %s228 = sshll.u32 [#allocation2], 4
          %s229 = int_to_ptr.vmem [resolvable:$true] %s228
          %234 = dma.hbm_to_vmem [thread:$0]  %s5, 3072, %s229, [#allocation3], 768, 768, 48
        $region32: #{visual_only_mlm_head.1} parent=11 // pred_fallthru
          _
        // Predicated region
        $region33: #{visual_only_mlm_head.1} parent=11 // pred_check
          %p235 = pneg %p169
        $region34: #{visual_only_mlm_head.1} parent=11 // pred_check_branch
          %237 = sbr.rel (%p235) target = $region36
        $region35: #{visual_only_mlm_head.1} parent=11 // pred_region
          _
        $region36: #{visual_only_mlm_head.1} parent=11 // pred_fallthru
          _
      $region12: #{visual_only_mlm_head.1} parent=5 // pred_fallthru
        _
      %p238 = scmp.lt.s32.totalorder %s17, 2
      // Predicated region
      $region37: #{visual_only_mlm_head.1} parent=5 // pred_check
        %p239 = pneg %p238
      $region38: #{visual_only_mlm_head.1} parent=5 // pred_check_branch
        %241 = sbr.rel (%p239) target = $region40
      $region39: #{visual_only_mlm_head.1} parent=5 // pred_region
        // Predicated region
        $region41: #{visual_only_mlm_head.1} parent=39 // pred_check
          %p242 = pneg %p37
        $region42: #{visual_only_mlm_head.1} parent=39 // pred_check_branch
          %244 = sbr.rel (%p242) target = $region44
        $region43: #{visual_only_mlm_head.1} parent=39 // pred_region
          %p245 = scmp.lt.s32.totalorder %s17, 1
          %s246 = scalar_select %p245, %s17, 1
          %s247 = smul.addr %s246, 4
          %s248 = scalar_lea.vmem %s0, %s247
        $region44: #{visual_only_mlm_head.1} parent=39 // pred_fallthru
          _
      $region40: #{visual_only_mlm_head.1} parent=5 // pred_fallthru
        _
      %p249 = scmp.le.s32.totalorder 1, %s17
      %p250 = scmp.lt.s32.totalorder %s17, 3
      %p251 = pnand %p249, %p250
      %p252 = pneg %p251
      // Predicated region
      $region45: #{visual_only_mlm_head.1} parent=5 // pred_check
        _
      $region46: #{visual_only_mlm_head.1} parent=5 // pred_check_branch
        %254 = sbr.rel (%p251) target = $region48
      $region47: #{visual_only_mlm_head.1} parent=5 // pred_region
        %s255 = ssub.s32 %s17, 1
        // Predicated region
        $region49: #{visual_only_mlm_head.1} parent=47 // pred_check
          %p256 = pneg %p148
        $region50: #{visual_only_mlm_head.1} parent=47 // pred_check_branch
          %258 = sbr.rel (%p256) target = $region52
        $region51: #{visual_only_mlm_head.1} parent=47 // pred_region
          %259 = dma.done [#allocation3], 3072
        $region52: #{visual_only_mlm_head.1} parent=47 // pred_fallthru
          _
        %p260 = scmp.lt.s32.totalorder %s22, 1
        %s261 = scalar_select %p260, %s22, 1
        %s262 = smul.addr %s261, 4
        %s263 = scalar_lea.vmem %s0, %s262
        %p264 = pneg %p43
        %p265 = pneg %p40
        %p266 = pneg %p64
        %p267 = pneg %p61
        %p268 = pneg %p85
        %p269 = pneg %p82
        %p270 = pneg %p106
        %p271 = pneg %p103
        %p272 = pneg %p127
        %p273 = pneg %p124
        %p274 = pneg %p148
        %p275 = pneg %p145
        %p276 = pneg %p169
        %p277 = pneg %p166
        %p278 = pneg %p195
        %p279 = pneg %p192
        %s280 = sand.u32 %s182, 1
        %s281 = scalar_lea.sflag [#allocation4], %s280
        %s282 = sand.u32 %s182, 1
        %s283 = smul.addr %s282, 96
        %s284 = scalar_lea.vmem [#allocation5], %s283
        %p285 = scmp.lt.s32.totalorder %s22, 1
        %s286 = scalar_select %p285, %s22, 1
        %s287 = smul.addr %s286, 4
        %s288 = scalar_lea.vmem %s0, %s287
        %v290 = vld [vmem:[%s288] sm:$0xf]
        %v291 = vld [vmem:[%s1] sm:$0xf]
        %v292 = vld [vmem:[%s1 + $0x4] sm:$0xf]
        %v293 = vld [vmem:[%s1 + $0x8] sm:$0xf]
        %v294 = vld [vmem:[%s1 + $0xc] sm:$0xf]
        %v295 = vld [vmem:[%s2] sm:$0x1]
        %v297 = vlaneseq
        %v298 = vshrl.u32 %v297, 7
        %v299 = vsub.s32 0, %v298
        %v300 = vrot.slane %v295, %v299
        %v306 = vunpack.c.l.b16 %v291
        %v307 = vunpack.c.l.b16 %v292
        %v308 = vunpack.c.l.b16 %v293
        %v309 = vunpack.c.l.b16 %v294
        %v310 = vpack.c.b16 %v307, %v306
        %v311 = vpack.c.b16 %v309, %v308
        %vm314 = vcmask 261120
        %v316 = vsel %vm314, %v290, 0
        %318 = vmatprep.subr.bf16.mxu0 0
        %319 = vmatpush1.bf16.msra.mxu0 0
        %320 = vmatprep.subr.bf16.mxu0 0
        %321 = vmatpush1.bf16.msra.mxu0 0
        %322 = vmatprep.subr.bf16.mxu0 0
        %323 = vmatpush1.bf16.msra.mxu0 0
        %324 = vmatprep.subr.bf16.mxu0 0
        %325 = vmatpush1.bf16.msra.mxu0 0
        %326 = vmatprep.subr.bf16.mxu0 0
        %327 = vmatpush1.bf16.msra.mxu0 0
        %328 = vmatprep.subr.bf16.mxu0 0
        %329 = vmatpush1.bf16.msra.mxu0 0
        %330 = vmatprep.subr.bf16.mxu0 0
        %331 = vmatpush1.bf16.msra.mxu0 %v311
        %332 = vmatprep.subr.bf16.mxu0 0
        %333 = vmatpush1.bf16.msra.mxu0 %v310
        %334 = vmatprep.subr.bf16.mxu0 0
        %335 = vmatpush2.bf16.msra.mxu0 0
        %336 = vmatprep.subr.bf16.mxu0 0
        %337 = vmatpush2.bf16.msra.mxu0 0
        %338 = vmatprep.subr.bf16.mxu0 0
        %339 = vmatpush2.bf16.msra.mxu0 0
        %340 = vmatprep.subr.bf16.mxu0 0
        %341 = vmatpush2.bf16.msra.mxu0 0
        %342 = vmatprep.subr.bf16.mxu0 0
        %343 = vmatpush2.bf16.msra.mxu0 0
        %344 = vmatprep.subr.bf16.mxu0 0
        %345 = vmatpush2.bf16.msra.mxu0 0
        %346 = vmatprep.subr.bf16.mxu0 0
        %347 = vmatpush2.bf16.msra.mxu0 0
        %348 = vmatprep.subr.bf16.mxu0 0
        %349 = vmatpush2.bf16.msra.mxu0 0
        %350 = vmatprep.mubr.bf16.mxu0 0
        %351 = vmatmul.mubr.bf16.gmra.mxu0 %v316
        %v352 = vpop.f32.mrf.mxu0
        %v353 = vadd.f32 %v300, %v352
        %v354 = vpop.f32.mrf.mxu0
        %v355 = vpop.f32.mrf.mxu0
        %v356 = vpop.f32.mrf.mxu0
        %357 = vdwg.mxu0
        %v358 = vmul.f32 %v353, 0.5
        %v359 = vmul.f32 %v353, 0.70710677
        %v360 = verf.f32.pop %v359
        %v361 = vadd.f32 %v360, 1.0
        %v362 = vmul.f32 %v358, %v361
        %v363 = vsel %vm314, %v362, 0.0
        %364 = vadd.xlane.f32.xlu0 %v363
        %v365 = vpop.xlane.xlu0 %364
        %v366 = vrcp.pop 32.0
        %v367 = vmul.f32 %v365, %v366
        %v368 = vsub.f32 %v362, %v367
        %v369 = vmul.f32 %v368, %v368
        %v370 = vsel %vm314, %v369, 0.0
        %371 = vadd.xlane.f32.xlu0 %v370
        %v372 = vpop.xlane.xlu0 %371
        %v373 = vmul.f32 %v372, %v366
        %v374 = vadd.f32 %v373, 1e-12
        %v375 = vrsqrt.pop %v374
        %v376 = vmul.f32 %v368, %v375
        %v377 = vld [vmem:[%s3] sm:$0x1]
        %v379 = vlaneseq
        %v380 = vshrl.u32 %v379, 7
        %v381 = vsub.s32 0, %v380
        %v382 = vrot.slane %v377, %v381
        %v384 = vmul.f32 %v376, %v382
        %v385 = vld [vmem:[%s4] sm:$0x1]
        %v387 = vlaneseq
        %v388 = vshrl.u32 %v387, 7
        %v389 = vsub.s32 0, %v388
        %v390 = vrot.slane %v385, %v389
        %v392 = vadd.f32 %v384, %v390
        %v393 = vpack.c.bf16 %v392, %v392
        %v394 = vld [vmem:[#allocation2] sm:$0xff]
        %v395 = vld [vmem:[#allocation2 + $0x8] sm:$0xff]
        %v396 = vld [vmem:[#allocation2 + $0x10] sm:$0xff]
        %v397 = vld [vmem:[#allocation2 + $0x18] sm:$0xff]
        %v398 = vld [vmem:[#allocation2 + $0x20] sm:$0xff]
        %v399 = vld [vmem:[#allocation2 + $0x28] sm:$0xff]
        %v400 = vld [vmem:[#allocation2 + $0x30] sm:$0xff]
        %v401 = vld [vmem:[#allocation2 + $0x38] sm:$0xff]
        %v402 = vld [vmem:[#allocation2 + $0x40] sm:$0xff]
        %v403 = vld [vmem:[#allocation2 + $0x48] sm:$0xff]
        %v404 = vld [vmem:[#allocation2 + $0x50] sm:$0xff]
        %v405 = vld [vmem:[#allocation2 + $0x58] sm:$0xff]
        %v406 = vld [vmem:[#allocation2 + $0x60] sm:$0xff]
        %v407 = vld [vmem:[#allocation2 + $0x68] sm:$0xff]
        %v408 = vld [vmem:[#allocation2 + $0x70] sm:$0xff]
        %v409 = vld [vmem:[#allocation2 + $0x78] sm:$0xff]
        %v410 = vld [vmem:[#allocation2 + $0x80] sm:$0xff]
        %v411 = vld [vmem:[#allocation2 + $0x88] sm:$0xff]
        %v412 = vld [vmem:[#allocation2 + $0x90] sm:$0xff]
        %v413 = vld [vmem:[#allocation2 + $0x98] sm:$0xff]
        %v414 = vld [vmem:[#allocation2 + $0xa0] sm:$0xff]
        %v415 = vld [vmem:[#allocation2 + $0xa8] sm:$0xff]
        %v416 = vld [vmem:[#allocation2 + $0xb0] sm:$0xff]
        %v417 = vld [vmem:[#allocation2 + $0xb8] sm:$0xff]
        %v418 = vld [vmem:[%s6] sm:$0xff]
        %v419 = vld [vmem:[%s6 + $0x8] sm:$0xf]
        %v422 = vlaneseq
        %v423 = vshrl.u32 %v422, 7
        %v424 = vsub.s32 0, %v423
        %v425 = vrot.slane %v418, %v424
        %v426 = vlaneseq
        %v427 = vshrl.u32 %v426, 7
        %v428 = vsub.s32 1, %v427
        %v429 = vrot.slane %v418, %v428
        %v430 = vlaneseq
        %v431 = vshrl.u32 %v430, 7
        %v432 = vsub.s32 2, %v431
        %v433 = vrot.slane %v418, %v432
        %v434 = vlaneseq
        %v435 = vshrl.u32 %v434, 7
        %v436 = vsub.s32 3, %v435
        %v437 = vrot.slane %v418, %v436
        %v438 = vlaneseq
        %v439 = vshrl.u32 %v438, 7
        %v440 = vsub.s32 4, %v439
        %v441 = vrot.slane %v418, %v440
        %v442 = vlaneseq
        %v443 = vshrl.u32 %v442, 7
        %v444 = vsub.s32 5, %v443
        %v445 = vrot.slane %v418, %v444
        %v446 = vlaneseq
        %v447 = vshrl.u32 %v446, 7
        %v448 = vsub.s32 6, %v447
        %v449 = vrot.slane %v418, %v448
        %v450 = vlaneseq
        %v451 = vshrl.u32 %v450, 7
        %v452 = vsub.s32 7, %v451
        %v453 = vrot.slane %v418, %v452
        %v454 = vlaneseq
        %v455 = vshrl.u32 %v454, 7
        %v456 = vsub.s32 0, %v455
        %v457 = vrot.slane %v419, %v456
        %v458 = vlaneseq
        %v459 = vshrl.u32 %v458, 7
        %v460 = vsub.s32 1, %v459
        %v461 = vrot.slane %v419, %v460
        %v462 = vlaneseq
        %v463 = vshrl.u32 %v462, 7
        %v464 = vsub.s32 2, %v463
        %v465 = vrot.slane %v419, %v464
        %v466 = vlaneseq
        %v467 = vshrl.u32 %v466, 7
        %v468 = vsub.s32 3, %v467
        %v469 = vrot.slane %v419, %v468
        %v506 = vunpack.c.l.b16 %v394
        %v507 = vunpack.c.h.b16 %v394
        %v508 = vunpack.c.l.b16 %v395
        %v509 = vunpack.c.h.b16 %v395
        %v510 = vunpack.c.l.b16 %v396
        %v511 = vunpack.c.h.b16 %v396
        %v512 = vunpack.c.l.b16 %v397
        %v513 = vunpack.c.h.b16 %v397
        %v514 = vunpack.c.l.b16 %v398
        %v515 = vunpack.c.h.b16 %v398
        %v516 = vunpack.c.l.b16 %v399
        %v517 = vunpack.c.h.b16 %v399
        %v518 = vunpack.c.l.b16 %v400
        %v519 = vunpack.c.h.b16 %v400
        %v520 = vunpack.c.l.b16 %v401
        %v521 = vunpack.c.h.b16 %v401
        %v522 = vunpack.c.l.b16 %v402
        %v523 = vunpack.c.h.b16 %v402
        %v524 = vunpack.c.l.b16 %v403
        %v525 = vunpack.c.h.b16 %v403
        %v526 = vunpack.c.l.b16 %v404
        %v527 = vunpack.c.h.b16 %v404
        %v528 = vunpack.c.l.b16 %v405
        %v529 = vunpack.c.h.b16 %v405
        %v530 = vunpack.c.l.b16 %v406
        %v531 = vunpack.c.h.b16 %v406
        %v532 = vunpack.c.l.b16 %v407
        %v533 = vunpack.c.h.b16 %v407
        %v534 = vunpack.c.l.b16 %v408
        %v535 = vunpack.c.h.b16 %v408
        %v536 = vunpack.c.l.b16 %v409
        %v537 = vunpack.c.h.b16 %v409
        %v538 = vunpack.c.l.b16 %v410
        %v539 = vunpack.c.h.b16 %v410
        %v540 = vunpack.c.l.b16 %v411
        %v541 = vunpack.c.h.b16 %v411
        %v542 = vunpack.c.l.b16 %v412
        %v543 = vunpack.c.h.b16 %v412
        %v544 = vunpack.c.l.b16 %v413
        %v545 = vunpack.c.h.b16 %v413
        %v546 = vunpack.c.l.b16 %v414
        %v547 = vunpack.c.h.b16 %v414
        %v548 = vunpack.c.l.b16 %v415
        %v549 = vunpack.c.h.b16 %v415
        %v550 = vunpack.c.l.b16 %v416
        %v551 = vunpack.c.h.b16 %v416
        %v552 = vunpack.c.l.b16 %v417
        %v553 = vunpack.c.h.b16 %v417
        %v554 = vpack.c.b16 %v518, %v506
        %v555 = vpack.c.b16 %v519, %v507
        %v556 = vpack.c.b16 %v520, %v508
        %v557 = vpack.c.b16 %v521, %v509
        %v558 = vpack.c.b16 %v522, %v510
        %v559 = vpack.c.b16 %v523, %v511
        %v560 = vpack.c.b16 %v524, %v512
        %v561 = vpack.c.b16 %v525, %v513
        %v562 = vpack.c.b16 %v526, %v514
        %v563 = vpack.c.b16 %v527, %v515
        %v564 = vpack.c.b16 %v528, %v516
        %v565 = vpack.c.b16 %v529, %v517
        %v566 = vpack.c.b16 %v542, %v530
        %v567 = vpack.c.b16 %v543, %v531
        %v568 = vpack.c.b16 %v544, %v532
        %v569 = vpack.c.b16 %v545, %v533
        %v570 = vpack.c.b16 %v546, %v534
        %v571 = vpack.c.b16 %v547, %v535
        %v572 = vpack.c.b16 %v548, %v536
        %v573 = vpack.c.b16 %v549, %v537
        %v574 = vpack.c.b16 %v550, %v538
        %v575 = vpack.c.b16 %v551, %v539
        %v576 = vpack.c.b16 %v552, %v540
        %v577 = vpack.c.b16 %v553, %v541
        %v603 = vsel %vm314, %v393, 0
        %605 = vmatprep.subr.bf16.mxu0 0
        %606 = vmatpush1.bf16.msra.mxu0 0
        %607 = vmatprep.subr.bf16.mxu0 0
        %608 = vmatpush1.bf16.msra.mxu0 0
        %609 = vmatprep.subr.bf16.mxu0 0
        %610 = vmatpush1.bf16.msra.mxu0 0
        %611 = vmatprep.subr.bf16.mxu0 0
        %612 = vmatpush1.bf16.msra.mxu0 0
        %613 = vmatprep.subr.bf16.mxu0 0
        %614 = vmatpush1.bf16.msra.mxu0 0
        %615 = vmatprep.subr.bf16.mxu0 0
        %616 = vmatpush1.bf16.msra.mxu0 0
        %617 = vmatprep.subr.bf16.mxu0 %v567
        %618 = vmatpush1.bf16.msra.mxu0 %v566
        %619 = vmatprep.subr.bf16.mxu0 %v555
        %620 = vmatpush1.bf16.msra.mxu0 %v554
        %621 = vmatprep.subr.bf16.mxu0 0
        %622 = vmatpush2.bf16.msra.mxu0 0
        %623 = vmatprep.subr.bf16.mxu0 0
        %624 = vmatpush2.bf16.msra.mxu0 0
        %625 = vmatprep.subr.bf16.mxu0 0
        %626 = vmatpush2.bf16.msra.mxu0 0
        %627 = vmatprep.subr.bf16.mxu0 0
        %628 = vmatpush2.bf16.msra.mxu0 0
        %629 = vmatprep.subr.bf16.mxu0 0
        %630 = vmatpush2.bf16.msra.mxu0 0
        %631 = vmatprep.subr.bf16.mxu0 0
        %632 = vmatpush2.bf16.msra.mxu0 0
        %633 = vmatprep.subr.bf16.mxu0 0
        %634 = vmatpush2.bf16.msra.mxu0 0
        %635 = vmatprep.subr.bf16.mxu0 0
        %636 = vmatpush2.bf16.msra.mxu0 0
        %637 = vmatprep.mubr.bf16.mxu0 0
        %638 = vmatmul.mubr.bf16.gmra.mxu0 %v603
        %v639 = vpop.f32.mrf.mxu0
        %v640 = vadd.f32 %v425, %v639
        %v641 = vpop.f32.mrf.mxu0
        %v642 = vadd.f32 %v429, %v641
        %v643 = vpop.f32.mrf.mxu0
        %v644 = vpop.f32.mrf.mxu0
        %645 = vdwg.mxu0
        %646 = vmatprep.subr.bf16.mxu0 0
        %647 = vmatpush1.bf16.msra.mxu0 0
        %648 = vmatprep.subr.bf16.mxu0 0
        %649 = vmatpush1.bf16.msra.mxu0 0
        %650 = vmatprep.subr.bf16.mxu0 0
        %651 = vmatpush1.bf16.msra.mxu0 0
        %652 = vmatprep.subr.bf16.mxu0 0
        %653 = vmatpush1.bf16.msra.mxu0 0
        %654 = vmatprep.subr.bf16.mxu0 0
        %655 = vmatpush1.bf16.msra.mxu0 0
        %656 = vmatprep.subr.bf16.mxu0 0
        %657 = vmatpush1.bf16.msra.mxu0 0
        %658 = vmatprep.subr.bf16.mxu0 %v569
        %659 = vmatpush1.bf16.msra.mxu0 %v568
        %660 = vmatprep.subr.bf16.mxu0 %v557
        %661 = vmatpush1.bf16.msra.mxu0 %v556
        %662 = vmatprep.subr.bf16.mxu0 0
        %663 = vmatpush2.bf16.msra.mxu0 0
        %664 = vmatprep.subr.bf16.mxu0 0
        %665 = vmatpush2.bf16.msra.mxu0 0
        %666 = vmatprep.subr.bf16.mxu0 0
        %667 = vmatpush2.bf16.msra.mxu0 0
        %668 = vmatprep.subr.bf16.mxu0 0
        %669 = vmatpush2.bf16.msra.mxu0 0
        %670 = vmatprep.subr.bf16.mxu0 0
        %671 = vmatpush2.bf16.msra.mxu0 0
        %672 = vmatprep.subr.bf16.mxu0 0
        %673 = vmatpush2.bf16.msra.mxu0 0
        %674 = vmatprep.subr.bf16.mxu0 0
        %675 = vmatpush2.bf16.msra.mxu0 0
        %676 = vmatprep.subr.bf16.mxu0 0
        %677 = vmatpush2.bf16.msra.mxu0 0
        %678 = vmatprep.mubr.bf16.mxu0 0
        %679 = vmatmul.mubr.bf16.gmra.mxu0 %v603
        %v680 = vpop.f32.mrf.mxu0
        %v681 = vadd.f32 %v433, %v680
        %v682 = vpop.f32.mrf.mxu0
        %v683 = vadd.f32 %v437, %v682
        %v684 = vpop.f32.mrf.mxu0
        %v685 = vpop.f32.mrf.mxu0
        %686 = vdwg.mxu0
        %687 = vmatprep.subr.bf16.mxu0 0
        %688 = vmatpush1.bf16.msra.mxu0 0
        %689 = vmatprep.subr.bf16.mxu0 0
        %690 = vmatpush1.bf16.msra.mxu0 0
        %691 = vmatprep.subr.bf16.mxu0 0
        %692 = vmatpush1.bf16.msra.mxu0 0
        %693 = vmatprep.subr.bf16.mxu0 0
        %694 = vmatpush1.bf16.msra.mxu0 0
        %695 = vmatprep.subr.bf16.mxu0 0
        %696 = vmatpush1.bf16.msra.mxu0 0
        %697 = vmatprep.subr.bf16.mxu0 0
        %698 = vmatpush1.bf16.msra.mxu0 0
        %699 = vmatprep.subr.bf16.mxu0 %v571
        %700 = vmatpush1.bf16.msra.mxu0 %v570
        %701 = vmatprep.subr.bf16.mxu0 %v559
        %702 = vmatpush1.bf16.msra.mxu0 %v558
        %703 = vmatprep.subr.bf16.mxu0 0
        %704 = vmatpush2.bf16.msra.mxu0 0
        %705 = vmatprep.subr.bf16.mxu0 0
        %706 = vmatpush2.bf16.msra.mxu0 0
        %707 = vmatprep.subr.bf16.mxu0 0
        %708 = vmatpush2.bf16.msra.mxu0 0
        %709 = vmatprep.subr.bf16.mxu0 0
        %710 = vmatpush2.bf16.msra.mxu0 0
        %711 = vmatprep.subr.bf16.mxu0 0
        %712 = vmatpush2.bf16.msra.mxu0 0
        %713 = vmatprep.subr.bf16.mxu0 0
        %714 = vmatpush2.bf16.msra.mxu0 0
        %715 = vmatprep.subr.bf16.mxu0 0
        %716 = vmatpush2.bf16.msra.mxu0 0
        %717 = vmatprep.subr.bf16.mxu0 0
        %718 = vmatpush2.bf16.msra.mxu0 0
        %719 = vmatprep.mubr.bf16.mxu0 0
        %720 = vmatmul.mubr.bf16.gmra.mxu0 %v603
        %v721 = vpop.f32.mrf.mxu0
        %v722 = vadd.f32 %v441, %v721
        %v723 = vpop.f32.mrf.mxu0
        %v724 = vadd.f32 %v445, %v723
        %v725 = vpop.f32.mrf.mxu0
        %v726 = vpop.f32.mrf.mxu0
        %727 = vdwg.mxu0
        %728 = vmatprep.subr.bf16.mxu0 0
        %729 = vmatpush1.bf16.msra.mxu0 0
        %730 = vmatprep.subr.bf16.mxu0 0
        %731 = vmatpush1.bf16.msra.mxu0 0
        %732 = vmatprep.subr.bf16.mxu0 0
        %733 = vmatpush1.bf16.msra.mxu0 0
        %734 = vmatprep.subr.bf16.mxu0 0
        %735 = vmatpush1.bf16.msra.mxu0 0
        %736 = vmatprep.subr.bf16.mxu0 0
        %737 = vmatpush1.bf16.msra.mxu0 0
        %738 = vmatprep.subr.bf16.mxu0 0
        %739 = vmatpush1.bf16.msra.mxu0 0
        %740 = vmatprep.subr.bf16.mxu0 %v573
        %741 = vmatpush1.bf16.msra.mxu0 %v572
        %742 = vmatprep.subr.bf16.mxu0 %v561
        %743 = vmatpush1.bf16.msra.mxu0 %v560
        %744 = vmatprep.subr.bf16.mxu0 0
        %745 = vmatpush2.bf16.msra.mxu0 0
        %746 = vmatprep.subr.bf16.mxu0 0
        %747 = vmatpush2.bf16.msra.mxu0 0
        %748 = vmatprep.subr.bf16.mxu0 0
        %749 = vmatpush2.bf16.msra.mxu0 0
        %750 = vmatprep.subr.bf16.mxu0 0
        %751 = vmatpush2.bf16.msra.mxu0 0
        %752 = vmatprep.subr.bf16.mxu0 0
        %753 = vmatpush2.bf16.msra.mxu0 0
        %754 = vmatprep.subr.bf16.mxu0 0
        %755 = vmatpush2.bf16.msra.mxu0 0
        %756 = vmatprep.subr.bf16.mxu0 0
        %757 = vmatpush2.bf16.msra.mxu0 0
        %758 = vmatprep.subr.bf16.mxu0 0
        %759 = vmatpush2.bf16.msra.mxu0 0
        %760 = vmatprep.mubr.bf16.mxu0 0
        %761 = vmatmul.mubr.bf16.gmra.mxu0 %v603
        %v762 = vpop.f32.mrf.mxu0
        %v763 = vadd.f32 %v449, %v762
        %v764 = vpop.f32.mrf.mxu0
        %v765 = vadd.f32 %v453, %v764
        %v766 = vpop.f32.mrf.mxu0
        %v767 = vpop.f32.mrf.mxu0
        %768 = vdwg.mxu0
        %769 = vmatprep.subr.bf16.mxu0 0
        %770 = vmatpush1.bf16.msra.mxu0 0
        %771 = vmatprep.subr.bf16.mxu0 0
        %772 = vmatpush1.bf16.msra.mxu0 0
        %773 = vmatprep.subr.bf16.mxu0 0
        %774 = vmatpush1.bf16.msra.mxu0 0
        %775 = vmatprep.subr.bf16.mxu0 0
        %776 = vmatpush1.bf16.msra.mxu0 0
        %777 = vmatprep.subr.bf16.mxu0 0
        %778 = vmatpush1.bf16.msra.mxu0 0
        %779 = vmatprep.subr.bf16.mxu0 0
        %780 = vmatpush1.bf16.msra.mxu0 0
        %781 = vmatprep.subr.bf16.mxu0 %v575
        %782 = vmatpush1.bf16.msra.mxu0 %v574
        %783 = vmatprep.subr.bf16.mxu0 %v563
        %784 = vmatpush1.bf16.msra.mxu0 %v562
        %785 = vmatprep.subr.bf16.mxu0 0
        %786 = vmatpush2.bf16.msra.mxu0 0
        %787 = vmatprep.subr.bf16.mxu0 0
        %788 = vmatpush2.bf16.msra.mxu0 0
        %789 = vmatprep.subr.bf16.mxu0 0
        %790 = vmatpush2.bf16.msra.mxu0 0
        %791 = vmatprep.subr.bf16.mxu0 0
        %792 = vmatpush2.bf16.msra.mxu0 0
        %793 = vmatprep.subr.bf16.mxu0 0
        %794 = vmatpush2.bf16.msra.mxu0 0
        %795 = vmatprep.subr.bf16.mxu0 0
        %796 = vmatpush2.bf16.msra.mxu0 0
        %797 = vmatprep.subr.bf16.mxu0 0
        %798 = vmatpush2.bf16.msra.mxu0 0
        %799 = vmatprep.subr.bf16.mxu0 0
        %800 = vmatpush2.bf16.msra.mxu0 0
        %801 = vmatprep.mubr.bf16.mxu0 0
        %802 = vmatmul.mubr.bf16.gmra.mxu0 %v603
        %v803 = vpop.f32.mrf.mxu0
        %v804 = vadd.f32 %v457, %v803
        %v805 = vpop.f32.mrf.mxu0
        %v806 = vadd.f32 %v461, %v805
        %v807 = vpop.f32.mrf.mxu0
        %v808 = vpop.f32.mrf.mxu0
        %809 = vdwg.mxu0
        %810 = vmatprep.subr.bf16.mxu0 0
        %811 = vmatpush1.bf16.msra.mxu0 0
        %812 = vmatprep.subr.bf16.mxu0 0
        %813 = vmatpush1.bf16.msra.mxu0 0
        %814 = vmatprep.subr.bf16.mxu0 0
        %815 = vmatpush1.bf16.msra.mxu0 0
        %816 = vmatprep.subr.bf16.mxu0 0
        %817 = vmatpush1.bf16.msra.mxu0 0
        %818 = vmatprep.subr.bf16.mxu0 0
        %819 = vmatpush1.bf16.msra.mxu0 0
        %820 = vmatprep.subr.bf16.mxu0 0
        %821 = vmatpush1.bf16.msra.mxu0 0
        %822 = vmatprep.subr.bf16.mxu0 %v577
        %823 = vmatpush1.bf16.msra.mxu0 %v576
        %824 = vmatprep.subr.bf16.mxu0 %v565
        %825 = vmatpush1.bf16.msra.mxu0 %v564
        %826 = vmatprep.subr.bf16.mxu0 0
        %827 = vmatpush2.bf16.msra.mxu0 0
        %828 = vmatprep.subr.bf16.mxu0 0
        %829 = vmatpush2.bf16.msra.mxu0 0
        %830 = vmatprep.subr.bf16.mxu0 0
        %831 = vmatpush2.bf16.msra.mxu0 0
        %832 = vmatprep.subr.bf16.mxu0 0
        %833 = vmatpush2.bf16.msra.mxu0 0
        %834 = vmatprep.subr.bf16.mxu0 0
        %835 = vmatpush2.bf16.msra.mxu0 0
        %836 = vmatprep.subr.bf16.mxu0 0
        %837 = vmatpush2.bf16.msra.mxu0 0
        %838 = vmatprep.subr.bf16.mxu0 0
        %839 = vmatpush2.bf16.msra.mxu0 0
        %840 = vmatprep.subr.bf16.mxu0 0
        %841 = vmatpush2.bf16.msra.mxu0 0
        %842 = vmatprep.mubr.bf16.mxu0 0
        %843 = vmatmul.mubr.bf16.gmra.mxu0 %v603
        %v844 = vpop.f32.mrf.mxu0
        %v845 = vadd.f32 %v465, %v844
        %v846 = vpop.f32.mrf.mxu0
        %v847 = vadd.f32 %v469, %v846
        %v848 = vpop.f32.mrf.mxu0
        %v849 = vpop.f32.mrf.mxu0
        %850 = vdwg.mxu0
        %851 = vst [vmem:[%s284] sm:$0xff] %v640
        %852 = vst [vmem:[%s284 + $0x8] sm:$0xff] %v642
        %853 = vst [vmem:[%s284 + $0x10] sm:$0xff] %v681
        %854 = vst [vmem:[%s284 + $0x18] sm:$0xff] %v683
        %855 = vst [vmem:[%s284 + $0x20] sm:$0xff] %v722
        %856 = vst [vmem:[%s284 + $0x28] sm:$0xff] %v724
        %857 = vst [vmem:[%s284 + $0x30] sm:$0xff] %v763
        %858 = vst [vmem:[%s284 + $0x38] sm:$0xff] %v765
        %859 = vst [vmem:[%s284 + $0x40] sm:$0xff] %v804
        %860 = vst [vmem:[%s284 + $0x48] sm:$0xff] %v806
        %861 = vst [vmem:[%s284 + $0x50] sm:$0xff] %v845
        %862 = vst [vmem:[%s284 + $0x58] sm:$0xff] %v847
        %s863 = sand.u32 %s182, 1
        %s864 = scalar_lea.sflag [#allocation4], %s863
        %s865 = sand.u32 %s182, 1
        %s866 = smul.addr %s865, 96
        %s867 = scalar_lea.vmem [#allocation5], %s866
        // Predicated region
        $region53: #{visual_only_mlm_head.1} parent=47 // pred_check
          %p868 = pneg %p192
        $region54: #{visual_only_mlm_head.1} parent=47 // pred_check_branch
          %870 = sbr.rel (%p868) target = $region56
        $region55: #{visual_only_mlm_head.1} parent=47 // pred_region
          %s872 = ssub.s32 1536, 1536
          %873 = vsyncadd %s864, %s872
          %s874 = smul.addr %s22, 12
          %s875 = smul.addr %s874, 128
          %s876 = scalar_lea.hbm %s7, %s875
          %s878 = sshll.u32 %s867, 4
          %s879 = int_to_ptr.vmem [resolvable:$true] %s878
          %881 = dma.vmem_to_hbm [thread:$0]  %s879, 1536, %s876, %s864
        $region56: #{visual_only_mlm_head.1} parent=47 // pred_fallthru
          _
      $region48: #{visual_only_mlm_head.1} parent=5 // pred_fallthru
        _
      %p882 = scmp.le.s32.totalorder 2, %s17
      // Predicated region
      $region57: #{visual_only_mlm_head.1} parent=5 // pred_check
        %p883 = pneg %p882
      $region58: #{visual_only_mlm_head.1} parent=5 // pred_check_branch
        %885 = sbr.rel (%p883) target = $region60
      $region59: #{visual_only_mlm_head.1} parent=5 // pred_region
        %s886 = ssub.s32 %s17, 2
        // Predicated region
        $region61: #{visual_only_mlm_head.1} parent=59 // pred_check
          %p887 = pneg %p198
        $region62: #{visual_only_mlm_head.1} parent=59 // pred_check_branch
          %889 = sbr.rel (%p887) target = $region64
        $region63: #{visual_only_mlm_head.1} parent=59 // pred_region
          %s890 = sand.u32 %s183, 1
          %s891 = scalar_lea.sflag [#allocation4], %s890
          %s892 = sand.u32 %s183, 1
          %s893 = smul.addr %s892, 96
          %s894 = scalar_lea.vmem [#allocation5], %s893
          %895 = dma.done %s891, 1536
        $region64: #{visual_only_mlm_head.1} parent=59 // pred_fallthru
          _
      $region60: #{visual_only_mlm_head.1} parent=5 // pred_fallthru
        _
    $region6: #{visual_only_mlm_head.1} parent=1 // loop_footer
      %s21 = sadd.s32 1, %s17
    $region7: #{visual_only_mlm_head.1} parent=1 // loop_footer_branch
      %16 = sbr.rel target = $region3
    $region8: #{visual_only_mlm_head.1} parent=1 // loop_exit
      _
    %896 = vsyncpa [#allocation3], 1
    %s897 = scalar_lea.sflag [#allocation3], 1
    %898 = vsyncpa %s897, 1
    %899 = vsyncpa [#allocation4], 1
    %s900 = scalar_lea.sflag [#allocation4], 1
    %901 = vsyncpa %s900, 1

</llo_original>
